<compile_context>
chip_gen: v7x
topology: tpu7x:2x2x1
jax: 0.10.0
libtpu: 0.0.40
codegen_flags: <defaults>
</compile_context>

<pallas_src>
import jax
import jax.numpy as jnp
from jax import lax
from jax.experimental import pallas as pl
from jax.experimental.pallas import tpu as pltpu

_INV_SQRT2 = 0.7071067811865476  # 1/sqrt(2)


def _gelu_exact(x):
    # Matches torch.nn.GELU() default (erf-based, non-approximate).
    # TODO(synk): on v6e/v7x the bias+GELU chain could run in bf16 (native VPU/EUP
    # bf16 path) or use the tanh approximation on the EUP if VALU-bound.
    return 0.5 * x * (1.0 + lax.erf(x * _INV_SQRT2))


# ------------------------------ kernels -------------------------------------


def mlp_kernel_resident(x_ref, w1_ref, b1_ref, w2_ref, b2_ref, o_ref):
    """Whole HID fits in VMEM: fused fc1 -> GELU -> fc2 per row tile.

    w1/b1/w2/b2 use constant index maps, so they stay VMEM-resident and are
    streamed from HBM exactly once for the whole kernel (all row tiles).
    """
    h = jnp.dot(x_ref[...], w1_ref[...], preferred_element_type=jnp.float32)
    h = _gelu_exact(h + b1_ref[...])                 # bias + exact GELU in f32
    y = jnp.dot(h.astype(w2_ref.dtype), w2_ref[...],
                preferred_element_type=jnp.float32)
    # dropout(p=0.0) == identity; fused bias add + store (no scratch pass)
    o_ref[...] = (y + b2_ref[...]).astype(o_ref.dtype)


def mlp_kernel_streamed(x_ref, w1_ref, b1_ref, w2_ref, b2_ref, o_ref, acc_ref):
    """HID streamed over the inner ("arbitrary") grid axis, f32 accumulator.

    The final partial product, bias add and output store are fused into the
    last step (no separate acc read-modify-write pass on k == last).
    """
    k = pl.program_id(1)
    nk = pl.num_programs(1)

    h = jnp.dot(x_ref[...], w1_ref[...], preferred_element_type=jnp.float32)
    h = _gelu_exact(h + b1_ref[...])
    partial = jnp.dot(h.astype(w2_ref.dtype), w2_ref[...],
                      preferred_element_type=jnp.float32)

    @pl.when(k == 0)
    def _():
        acc_ref[...] = partial

    @pl.when(jnp.logical_and(k > 0, k < nk - 1))
    def _():
        acc_ref[...] += partial

    @pl.when(k == nk - 1)
    def _():
        o_ref[...] = (acc_ref[...] + partial + b2_ref[...]).astype(o_ref.dtype)


# ------------------------------ wrapper --------------------------------------


def _round_up(x, m):
    return -(-x // m) * m


def _vmem_capacity_bytes():
    """Physical VMEM per TensorCore for this generation (best effort)."""
    try:
        return int(pltpu.get_tpu_info().vmem_capacity_bytes)
    except Exception:
        pass
    try:
        kind = jax.devices()[0].device_kind.lower()
    except Exception:
        kind = ""
    if "v7" in kind:
        return 64 << 20          # v7x: 64 MiB per TensorCore
    return 128 << 20             # v5e / v6e: 128 MiB


def _num_tensorcores():
    try:
        kind = jax.devices()[0].device_kind.lower()
    except Exception:
        kind = ""
    return 2 if "v7" in kind else 1


def _choose_tiling(M, IN_p, HID_p, OUT_p, w_itm, out_itm, budget):
    """Pick (tm, th).  Prefers VMEM-resident weights (th == HID_p), then the
    largest row tile tm that fits the VMEM budget."""
    m8 = _round_up(max(M, 1), 8)

    def fits(tm, th):
        n_k = HID_p // th
        resident = (n_k == 1)
        w_bufs = 1 if resident else 2           # resident blocks are not re-DMA'd
        need = (2 * tm * IN_p * w_itm                      # x row tiles (dbl buf)
                + 2 * tm * OUT_p * out_itm                 # output tiles (dbl buf)
                + w_bufs * (IN_p * th + th * OUT_p) * w_itm  # w1 / w2 chunks
                + 2 * (th + OUT_p) * 4                     # biases (f32)
                + tm * th * 4                              # f32 GELU intermediate
                + (0 if resident else tm * OUT_p * 4))     # fc2 accumulator
        return int(need * 1.25) + (1 << 20) <= budget

    tm_candidates = []
    for t in (1024, 768, 512, 384, 256, 128, 64, 32, 16, 8):
        t = _round_up(min(t, m8), 8)
        if t not in tm_candidates:
            tm_candidates.append(t)

    th_candidates = [HID_p]
    th = HID_p // 2
    while th >= 128:
        if HID_p % th == 0 and th % 128 == 0 and th not in th_candidates:
            th_candidates.append(th)
        th //= 2

    for th in th_candidates:            # resident weights first (th == HID_p)
        for tm in tm_candidates:        # largest row tile that fits
            if fits(tm, th):
                return tm, th
    return tm_candidates[-1], th_candidates[-1]


def mlp_pallas(x, w1, b1, w2, b2, *, out_dtype=None, use_bf16=True):
    """x: (M, IN); w1: (IN, HID); b1: (HID,); w2: (HID, OUT); b2: (OUT,)."""
    M, IN = x.shape
    HID = w1.shape[1]
    OUT = w2.shape[1]
    # TODO(synk): pass out_dtype=jnp.bfloat16 when the downstream consumer
    # accepts bf16 to halve the output HBM writeback.
    out_dtype = out_dtype or x.dtype

    cdtype = jnp.bfloat16 if use_bf16 else x.dtype
    w_itm = jnp.dtype(cdtype).itemsize
    out_itm = jnp.dtype(out_dtype).itemsize

    # --- lane-pad every feature dim to a multiple of 128 (dense stores / MXU) ---
    IN_p = _round_up(IN, 128)
    HID_p = _round_up(HID, 128)
    OUT_p = _round_up(OUT, 128)

    # --- generation-aware VMEM limit (never exceeds physical; 100 MiB max) ---
    cap = _vmem_capacity_bytes()
    vmem_limit = int(max(min(cap - (8 << 20), 100 << 20), 16 << 20))

    tm, th = _choose_tiling(M, IN_p, HID_p, OUT_p, w_itm, out_itm, vmem_limit)
    n_k = HID_p // th

    # --- row padding: multiple of tm; on v7x keep the row-tile count a multiple
    #     of the TensorCore count so the "parallel" axis splits across cores ---
    M_pad = _round_up(M, tm)
    grid_m = M_pad // tm
    n_tc = _num_tensorcores()
    if n_tc > 1 and grid_m > 1 and grid_m % n_tc != 0:
        grid_m = _round_up(grid_m, n_tc)
        M_pad = grid_m * tm

    # --- pad / cast operands.  Zero padding keeps the math exact: padded input
    #     columns multiply zero w1 rows; padded hidden units hit zero w2 rows;
    #     padded output columns / rows are sliced off at the end. ---
    x_c = jnp.pad(x.astype(cdtype), ((0, M_pad - M), (0, IN_p - IN)))
    w1_c = jnp.pad(w1.astype(cdtype), ((0, IN_p - IN), (0, HID_p - HID)))
    w2_c = jnp.pad(w2.astype(cdtype), ((0, HID_p - HID), (0, OUT_p - OUT)))
    b1_2d = jnp.pad(b1.astype(jnp.float32), (0, HID_p - HID)).reshape(1, HID_p)
    b2_2d = jnp.pad(b2.astype(jnp.float32), (0, OUT_p - OUT)).reshape(1, OUT_p)

    # --- cost estimate matching the actual HBM traffic of the chosen design ---
    weight_reads = 1 if n_k == 1 else grid_m
    cost = pl.CostEstimate(
        flops=int(2 * M_pad * (IN_p * HID_p + HID_p * OUT_p)),
        transcendentals=int(M_pad * HID_p),
        bytes_accessed=int(M_pad * IN_p * w_itm
                           + weight_reads * (IN_p * HID_p + HID_p * OUT_p) * w_itm
                           + (HID_p + OUT_p) * 4
                           + M_pad * OUT_p * out_itm),
    )

    if n_k == 1:
        # Resident-weight path: single "parallel" row-tile axis; weights use
        # constant index maps so they are DMA'd exactly once.
        grid = (grid_m,)
        in_specs = [
            pl.BlockSpec((tm, IN_p), lambda i: (i, 0)),      # x row tile
            pl.BlockSpec((IN_p, HID_p), lambda i: (0, 0)),   # w1 (resident)
            pl.BlockSpec((1, HID_p), lambda i: (0, 0)),      # b1 (resident)
            pl.BlockSpec((HID_p, OUT_p), lambda i: (0, 0)),  # w2 (resident)
            pl.BlockSpec((1, OUT_p), lambda i: (0, 0)),      # b2 (resident)
        ]
        out_specs = pl.BlockSpec((tm, OUT_p), lambda i: (i, 0))
        scratch_shapes = []
        kernel = mlp_kernel_resident
        dim_sem = ("parallel",)
    else:
        # Streamed fallback: HID chunks over the inner "arbitrary" axis.
        grid = (grid_m, n_k)
        in_specs = [
            pl.BlockSpec((tm, IN_p), lambda i, k: (i, 0)),   # x row tile
            pl.BlockSpec((IN_p, th), lambda i, k: (0, k)),   # w1 HID chunk
            pl.BlockSpec((1, th), lambda i, k: (0, k)),      # b1 HID chunk
            pl.BlockSpec((th, OUT_p), lambda i, k: (k, 0)),  # w2 HID chunk
            pl.BlockSpec((1, OUT_p), lambda i, k: (0, 0)),   # b2
        ]
        out_specs = pl.BlockSpec((tm, OUT_p), lambda i, k: (i, 0))
        scratch_shapes = [pltpu.VMEM((tm, OUT_p), jnp.float32)]
        kernel = mlp_kernel_streamed
        dim_sem = ("parallel", "arbitrary")

    y = pl.pallas_call(
        kernel,
        out_shape=jax.ShapeDtypeStruct((M_pad, OUT_p), out_dtype),
        grid_spec=pltpu.PrefetchScalarGridSpec(
            num_scalar_prefetch=0,
            grid=grid,
            in_specs=in_specs,
            out_specs=out_specs,
            scratch_shapes=scratch_shapes,
        ),
        compiler_params=pltpu.CompilerParams(
            dimension_semantics=dim_sem,
            vmem_limit_bytes=vmem_limit,
        ),
        cost_estimate=cost,
    )(x_c, w1_c, b1_2d, w2_c, b2_2d)

    return y[:M, :OUT]


def mlp_forward(x_tokens, params, *, out_dtype=None, use_bf16=True):
    """x_tokens: (B, N, C). Returns (B, N, OUT)."""
    B, N, C = x_tokens.shape
    w1, b1, w2, b2 = params
    x2d = x_tokens.reshape(B * N, C)
    y2d = mlp_pallas(x2d, w1, b1, w2, b2, out_dtype=out_dtype, use_bf16=use_bf16)
    return y2d.reshape(B, N, w2.shape[1])


def init_params(key, in_features, hidden_features, out_features):
    # Deterministic init mimicking nn.Linear's uniform(-1/sqrt(fan_in), +)
    k1, k2, k3, k4 = jax.random.split(key, 4)
    lim1 = 1.0 / jnp.sqrt(in_features)
    lim2 = 1.0 / jnp.sqrt(hidden_features)
    w1 = jax.random.uniform(k1, (in_features, hidden_features), jnp.float32, -lim1, lim1)
    b1 = jax.random.uniform(k2, (hidden_features,), jnp.float32, -lim1, lim1)
    w2 = jax.random.uniform(k3, (hidden_features, out_features), jnp.float32, -lim2, lim2)
    b2 = jax.random.uniform(k4, (out_features,), jnp.float32, -lim2, lim2)
    return w1, b1, w2, b2


if __name__ == "__main__":
    key = jax.random.PRNGKey(0)
    kx, kp = jax.random.split(key)

    # Small shapes consistent with the module: token sequences (B, N, C)
    B, N = 2, 8
    in_features, hidden_features, out_features = 32, 64, 32

    x = jax.random.normal(kx, (B, N, in_features), jnp.float32)
    params = init_params(kp, in_features, hidden_features, out_features)
    w1, b1, w2, b2 = params

    y = mlp_forward(x, params)
    jax.block_until_ready(y)

    # Reference with the SAME bf16-operand / f32-accumulate semantics as the kernel.
    xc = x.reshape(B * N, in_features).astype(jnp.bfloat16)
    h_ref = jnp.dot(xc, w1.astype(jnp.bfloat16), preferred_element_type=jnp.float32) + b1
    h_ref = _gelu_exact(h_ref)
    y_ref = jnp.dot(h_ref.astype(jnp.bfloat16), w2.astype(jnp.bfloat16),
                    preferred_element_type=jnp.float32) + b2
    y_ref = y_ref.reshape(B, N, out_features)
    assert jnp.allclose(y, y_ref, atol=5e-3, rtol=5e-3), "mismatch vs bf16-path reference"

    # Looser sanity check against the pure-f32 torch-equivalent math.
    h32 = x.reshape(B * N, in_features) @ w1 + b1
    y32 = (_gelu_exact(h32) @ w2 + b2).reshape(B, N, out_features)
    assert jnp.allclose(y, y32, atol=5e-2, rtol=5e-2), "mismatch vs f32 reference"

    print("KERNEL_OK")
</pallas_src>

<mosaic_0001>
module attributes {stable_mosaic.version = 11 : i64} {
  func.func @mlp_kernel_resident(%arg0: i32, %arg1: memref<16x128xbf16, #tpu.memory_space<vmem>>, %arg2: memref<128x128xbf16, #tpu.memory_space<vmem>>, %arg3: memref<1x128xf32, #tpu.memory_space<vmem>>, %arg4: memref<128x128xbf16, #tpu.memory_space<vmem>>, %arg5: memref<1x128xf32, #tpu.memory_space<vmem>>, %arg6: memref<16x128xf32, #tpu.memory_space<vmem>>) attributes {dimension_semantics = [#tpu.dimension_semantics<parallel>], iteration_bounds = array<i64: 1>, scalar_prefetch = 0 : i64, scratch_operands = 0 : i64, tpu.core_type = #tpu.core_type<tc>, window_params = [{transform_indices = @transform_0, window_bounds = array<i64: 16, 128>}, {pipeline_mode = #tpu.pipeline_mode<synchronous>, transform_indices = @transform_1, window_bounds = array<i64: 128, 128>}, {pipeline_mode = #tpu.pipeline_mode<synchronous>, transform_indices = @transform_2, window_bounds = array<i64: 1, 128>}, {pipeline_mode = #tpu.pipeline_mode<synchronous>, transform_indices = @transform_3, window_bounds = array<i64: 128, 128>}, {pipeline_mode = #tpu.pipeline_mode<synchronous>, transform_indices = @transform_4, window_bounds = array<i64: 1, 128>}, {transform_indices = @transform_5, window_bounds = array<i64: 16, 128>}]} {
    %c0 = arith.constant 0 : index
    %c0_0 = arith.constant 0 : index
    %0 = vector.load %arg1[%c0, %c0_0] : memref<16x128xbf16, #tpu.memory_space<vmem>>, vector<16x128xbf16>
    %c0_1 = arith.constant 0 : index
    %c0_2 = arith.constant 0 : index
    %1 = vector.load %arg2[%c0_1, %c0_2] : memref<128x128xbf16, #tpu.memory_space<vmem>>, vector<128x128xbf16>
    %cst = arith.constant dense<0.000000e+00> : vector<16x128xf32>
    %2 = tpu.matmul %0, %1, %cst {dimension_numbers = #tpu.dot_dimension_numbers<[1], [0], [0], [1], [0, 0, 1, 1], [], []>} : vector<16x128xbf16>, vector<128x128xbf16>, vector<16x128xf32> -> vector<16x128xf32>
    %c0_3 = arith.constant 0 : index
    %c0_4 = arith.constant 0 : index
    %3 = vector.load %arg3[%c0_3, %c0_4] : memref<1x128xf32, #tpu.memory_space<vmem>>, vector<1x128xf32>
    %4 = vector.broadcast %3 : vector<1x128xf32> to vector<16x128xf32>
    %5 = arith.addf %2, %4 : vector<16x128xf32>
    %cst_5 = arith.constant 5.000000e-01 : f32
    %6 = vector.broadcast %cst_5 : f32 to vector<16x128xf32>
    %7 = arith.mulf %6, %5 : vector<16x128xf32>
    %cst_6 = arith.constant 0.707106769 : f32
    %8 = vector.broadcast %cst_6 : f32 to vector<16x128xf32>
    %9 = arith.mulf %5, %8 : vector<16x128xf32>
    %10 = math.erf %9 : vector<16x128xf32>
    %cst_7 = arith.constant 1.000000e+00 : f32
    %11 = vector.broadcast %cst_7 : f32 to vector<16x128xf32>
    %12 = arith.addf %11, %10 : vector<16x128xf32>
    %13 = arith.mulf %7, %12 : vector<16x128xf32>
    %14 = arith.truncf %13 : vector<16x128xf32> to vector<16x128xbf16>
    %c0_8 = arith.constant 0 : index
    %c0_9 = arith.constant 0 : index
    %15 = vector.load %arg4[%c0_8, %c0_9] : memref<128x128xbf16, #tpu.memory_space<vmem>>, vector<128x128xbf16>
    %cst_10 = arith.constant dense<0.000000e+00> : vector<16x128xf32>
    %16 = tpu.matmul %14, %15, %cst_10 {dimension_numbers = #tpu.dot_dimension_numbers<[1], [0], [0], [1], [0, 0, 1, 1], [], []>} : vector<16x128xbf16>, vector<128x128xbf16>, vector<16x128xf32> -> vector<16x128xf32>
    %c0_11 = arith.constant 0 : index
    %c0_12 = arith.constant 0 : index
    %17 = vector.load %arg5[%c0_11, %c0_12] : memref<1x128xf32, #tpu.memory_space<vmem>>, vector<1x128xf32>
    %18 = vector.broadcast %17 : vector<1x128xf32> to vector<16x128xf32>
    %19 = arith.addf %16, %18 : vector<16x128xf32>
    %c0_13 = arith.constant 0 : index
    %c0_14 = arith.constant 0 : index
    %20 = vector.load %arg6[%c0_13, %c0_14] : memref<16x128xf32, #tpu.memory_space<vmem>>, vector<16x128xf32>
    tpu.vector_store %arg6[%c0_13, %c0_14], %19 {strides = array<i32>} : memref<16x128xf32, #tpu.memory_space<vmem>>, vector<16x128xf32>,
    return
  }
  func.func @transform_0(%arg0: i32) -> (i32, i32) {
    %c0_i32 = arith.constant 0 : i32
    %c0_i32_0 = arith.constant 0 : i32
    return %arg0, %c0_i32 : i32, i32
  }
  func.func @transform_1(%arg0: i32) -> (i32, i32) {
    %c0_i32 = arith.constant 0 : i32
    %c0_i32_0 = arith.constant 0 : i32
    %c0_i32_1 = arith.constant 0 : i32
    return %c0_i32, %c0_i32_0 : i32, i32
  }
  func.func @transform_2(%arg0: i32) -> (i32, i32) {
    %c0_i32 = arith.constant 0 : i32
    %c0_i32_0 = arith.constant 0 : i32
    %c0_i32_1 = arith.constant 0 : i32
    return %c0_i32, %c0_i32_0 : i32, i32
  }
  func.func @transform_3(%arg0: i32) -> (i32, i32) {
    %c0_i32 = arith.constant 0 : i32
    %c0_i32_0 = arith.constant 0 : i32
    %c0_i32_1 = arith.constant 0 : i32
    return %c0_i32, %c0_i32_0 : i32, i32
  }
  func.func @transform_4(%arg0: i32) -> (i32, i32) {
    %c0_i32 = arith.constant 0 : i32
    %c0_i32_0 = arith.constant 0 : i32
    %c0_i32_1 = arith.constant 0 : i32
    return %c0_i32, %c0_i32_0 : i32, i32
  }
  func.func @transform_5(%arg0: i32) -> (i32, i32) {
    %c0_i32 = arith.constant 0 : i32
    %c0_i32_0 = arith.constant 0 : i32
    return %arg0, %c0_i32 : i32, i32
  }
}

</mosaic_0001>

<llo_original>
// kernel: tpu_custom_call.1
$region0: #{tpu_custom_call.1}
  #allocation0 [shape = 'u32[]', space=smem, size = 0x4, offset = 0x4, fixed_abs, tag = 'smem constant byte address 0x4 - core index']
  #allocation1 [shape = 'u32[144,128]{1,0:T(1,128)}', space=vmem, size = 0x12000, scoped, tag = 'internal scratch']
  %s0 = inlined_call_operand.hbm [shape: bf16[16,128], index: 0, kind: input, shape index: {}]
  %s1 = inlined_call_operand.hbm [shape: bf16[128,128], index: 1, kind: input, shape index: {}]
  %s2 = inlined_call_operand.hbm [shape: f32[1,128], index: 2, kind: input, shape index: {}]
  %s3 = inlined_call_operand.hbm [shape: bf16[128,128], index: 3, kind: input, shape index: {}]
  %s4 = inlined_call_operand.hbm [shape: f32[1,128], index: 4, kind: input, shape index: {}]
  %s5 = inlined_call_operand.hbm [shape: f32[16,128], index: 5, kind: output, shape index: {}]
  %s6 = sld [smem:[#allocation0]]
  $region50: #{tpu_custom_call.1} parent=0
    _
  %s8 = ssub.s32 1, %s6
  %s9 = scalar_select 0, %s8, %s6
  $region1: #{tpu_custom_call.1} parent=0
    #allocation2 [shape = 'u8[4096]{0}', space=vmem, size = 0x1000, scoped, tag = 'input window, operand 0, single buffered']
    #allocation3 [shape = 's32[1]{0}', space=sflag, size = 0x4, scoped, tag = 'scoped memory for tpu_custom_call.1']
    #allocation4 [shape = 's32[1]{0}', space=sflag, size = 0x4, scoped, tag = 'scoped memory for tpu_custom_call.1']
    #allocation5 [shape = 'u8[32768]{0}', space=vmem, size = 0x8000, scoped, tag = 'input window, operand 1, single buffered']
    #allocation6 [shape = 's32[1]{0}', space=sflag, size = 0x4, scoped, tag = 'scoped memory for tpu_custom_call.1']
    #allocation7 [shape = 'u8[512]{0}', space=vmem, size = 0x400, scoped, tag = 'input window, operand 2, single buffered']
    #allocation8 [shape = 'u8[32768]{0}', space=vmem, size = 0x8000, scoped, tag = 'input window, operand 3, single buffered']
    #allocation9 [shape = 's32[1]{0}', space=sflag, size = 0x4, scoped, tag = 'scoped memory for tpu_custom_call.1']
    #allocation10 [shape = 'u8[512]{0}', space=vmem, size = 0x400, scoped, tag = 'input window, operand 4, single buffered']
    #allocation11 [shape = 'u8[8192]{0}', space=vmem, size = 0x2000, scoped, tag = 'output window, operand 0, single buffered']
    %10 = vsyncpa [#allocation3], 0
    %11 = vsyncpa [#allocation6], 0
    %12 = vsyncpa [#allocation9], 0
    %13 = vsyncpa [#allocation4], 0
    // Predicated region
    $region2: #{tpu_custom_call.1} parent=1 // pred_check
      _
    $region3: #{tpu_custom_call.1} parent=1 // pred_check_branch
      %15 = sbr.rel (0) target = $region5
    $region4: #{tpu_custom_call.1} parent=1 // pred_region
      %s17 = ssub.s32 128, 128
      %18 = vsyncadd [#allocation3], %s17
      %s19 = sshll.u32 [#allocation2], 4
      %s20 = int_to_ptr.vmem [resolvable:$true] %s19
      %25 = dma.hbm_to_vmem [thread:$0]  %s0, 128, %s20, [#allocation3], 64, 64, 4
    $region5: #{tpu_custom_call.1} parent=1 // pred_fallthru
      _
    // Predicated region
    $region6: #{tpu_custom_call.1} parent=1 // pred_check
      _
    $region7: #{tpu_custom_call.1} parent=1 // pred_check_branch
      %27 = sbr.rel (0) target = $region9
    $region8: #{tpu_custom_call.1} parent=1 // pred_region
      %s29 = ssub.s32 1024, 1024
      %30 = vsyncadd [#allocation6], %s29
      %s31 = sshll.u32 [#allocation5], 4
      %s32 = int_to_ptr.vmem [resolvable:$true] %s31
      %37 = dma.hbm_to_vmem [thread:$0]  %s1, 1024, %s32, [#allocation6], 64, 64, 4
    $region9: #{tpu_custom_call.1} parent=1 // pred_fallthru
      _
    // Predicated region
    $region10: #{tpu_custom_call.1} parent=1 // pred_check
      _
    $region11: #{tpu_custom_call.1} parent=1 // pred_check_branch
      %39 = sbr.rel (0) target = $region13
    $region12: #{tpu_custom_call.1} parent=1 // pred_region
      %s41 = ssub.s32 16, 16
      %42 = vsyncadd [#allocation6], %s41
      %s44 = sshll.u32 [#allocation7], 4
      %s45 = int_to_ptr.vmem [resolvable:$true] %s44
      %47 = dma.hbm_to_vmem [thread:$0]  %s2, 16, %s45, [#allocation6]
    $region13: #{tpu_custom_call.1} parent=1 // pred_fallthru
      _
    // Predicated region
    $region14: #{tpu_custom_call.1} parent=1 // pred_check
      _
    $region15: #{tpu_custom_call.1} parent=1 // pred_check_branch
      %49 = sbr.rel (0) target = $region17
    $region16: #{tpu_custom_call.1} parent=1 // pred_region
      %s51 = ssub.s32 1024, 1024
      %52 = vsyncadd [#allocation9], %s51
      %s53 = sshll.u32 [#allocation8], 4
      %s54 = int_to_ptr.vmem [resolvable:$true] %s53
      %59 = dma.hbm_to_vmem [thread:$0]  %s3, 1024, %s54, [#allocation9], 64, 64, 4
    $region17: #{tpu_custom_call.1} parent=1 // pred_fallthru
      _
    // Predicated region
    $region18: #{tpu_custom_call.1} parent=1 // pred_check
      _
    $region19: #{tpu_custom_call.1} parent=1 // pred_check_branch
      %61 = sbr.rel (0) target = $region21
    $region20: #{tpu_custom_call.1} parent=1 // pred_region
      %s63 = ssub.s32 16, 16
      %64 = vsyncadd [#allocation9], %s63
      %s66 = sshll.u32 [#allocation10], 4
      %s67 = int_to_ptr.vmem [resolvable:$true] %s66
      %69 = dma.hbm_to_vmem [thread:$0]  %s4, 16, %s67, [#allocation9]
    $region21: #{tpu_custom_call.1} parent=1 // pred_fallthru
      _
    // Predicated region
    $region22: #{tpu_custom_call.1} parent=1 // pred_check
      _
    $region23: #{tpu_custom_call.1} parent=1 // pred_check_branch
      %71 = sbr.rel (0) target = $region25
    $region24: #{tpu_custom_call.1} parent=1 // pred_region
      %72 = dma.done [#allocation3], 128
    $region25: #{tpu_custom_call.1} parent=1 // pred_fallthru
      _
    // Predicated region
    $region26: #{tpu_custom_call.1} parent=1 // pred_check
      _
    $region27: #{tpu_custom_call.1} parent=1 // pred_check_branch
      %74 = sbr.rel (0) target = $region29
    $region28: #{tpu_custom_call.1} parent=1 // pred_region
      %75 = dma.done [#allocation6], 1024
    $region29: #{tpu_custom_call.1} parent=1 // pred_fallthru
      _
    // Predicated region
    $region30: #{tpu_custom_call.1} parent=1 // pred_check
      _
    $region31: #{tpu_custom_call.1} parent=1 // pred_check_branch
      %77 = sbr.rel (0) target = $region33
    $region32: #{tpu_custom_call.1} parent=1 // pred_region
      %78 = dma.done [#allocation6], 16
    $region33: #{tpu_custom_call.1} parent=1 // pred_fallthru
      _
    // Predicated region
    $region34: #{tpu_custom_call.1} parent=1 // pred_check
      _
    $region35: #{tpu_custom_call.1} parent=1 // pred_check_branch
      %80 = sbr.rel (0) target = $region37
    $region36: #{tpu_custom_call.1} parent=1 // pred_region
      %81 = dma.done [#allocation9], 1024
    $region37: #{tpu_custom_call.1} parent=1 // pred_fallthru
      _
    // Predicated region
    $region38: #{tpu_custom_call.1} parent=1 // pred_check
      _
    $region39: #{tpu_custom_call.1} parent=1 // pred_check_branch
      %83 = sbr.rel (0) target = $region41
    $region40: #{tpu_custom_call.1} parent=1 // pred_region
      %84 = dma.done [#allocation9], 16
    $region41: #{tpu_custom_call.1} parent=1 // pred_fallthru
      _
    %v86 = vld [vmem:[#allocation2] sm:$0xf]
    %v87 = vld [vmem:[#allocation2 + $0x4] sm:$0xf]
    %v88 = vld [vmem:[#allocation5] sm:$0xf]
    %v89 = vld [vmem:[#allocation5 + $0x4] sm:$0xf]
    %v90 = vld [vmem:[#allocation5 + $0x8] sm:$0xf]
    %v91 = vld [vmem:[#allocation5 + $0xc] sm:$0xf]
    %v92 = vld [vmem:[#allocation5 + $0x10] sm:$0xf]
    %v93 = vld [vmem:[#allocation5 + $0x14] sm:$0xf]
    %v94 = vld [vmem:[#allocation5 + $0x18] sm:$0xf]
    %v95 = vld [vmem:[#allocation5 + $0x1c] sm:$0xf]
    %v96 = vld [vmem:[#allocation5 + $0x20] sm:$0xf]
    %v97 = vld [vmem:[#allocation5 + $0x24] sm:$0xf]
    %v98 = vld [vmem:[#allocation5 + $0x28] sm:$0xf]
    %v99 = vld [vmem:[#allocation5 + $0x2c] sm:$0xf]
    %v100 = vld [vmem:[#allocation5 + $0x30] sm:$0xf]
    %v101 = vld [vmem:[#allocation5 + $0x34] sm:$0xf]
    %v102 = vld [vmem:[#allocation5 + $0x38] sm:$0xf]
    %v103 = vld [vmem:[#allocation5 + $0x3c] sm:$0xf]
    %v104 = vld [vmem:[#allocation7] sm:$0x1]
    %v106 = vlaneseq
    %v107 = vshrl.u32 %v106, 7
    %v108 = vsub.s32 0, %v107
    %v109 = vrot.slane %v104, %v108
    %v113 = vunpack.c.l.b16 %v86
    %v114 = vunpack.c.l.b16 %v87
    %v115 = vpack.c.b16 %v114, %v113
    %v133 = vunpack.c.l.b16 %v88
    %v134 = vunpack.c.l.b16 %v89
    %v135 = vunpack.c.l.b16 %v90
    %v136 = vunpack.c.l.b16 %v91
    %v137 = vunpack.c.l.b16 %v92
    %v138 = vunpack.c.l.b16 %v93
    %v139 = vunpack.c.l.b16 %v94
    %v140 = vunpack.c.l.b16 %v95
    %v141 = vunpack.c.l.b16 %v96
    %v142 = vunpack.c.l.b16 %v97
    %v143 = vunpack.c.l.b16 %v98
    %v144 = vunpack.c.l.b16 %v99
    %v145 = vunpack.c.l.b16 %v100
    %v146 = vunpack.c.l.b16 %v101
    %v147 = vunpack.c.l.b16 %v102
    %v148 = vunpack.c.l.b16 %v103
    %v149 = vpack.c.b16 %v134, %v133
    %v150 = vpack.c.b16 %v136, %v135
    %v151 = vpack.c.b16 %v138, %v137
    %v152 = vpack.c.b16 %v140, %v139
    %v153 = vpack.c.b16 %v142, %v141
    %v154 = vpack.c.b16 %v144, %v143
    %v155 = vpack.c.b16 %v146, %v145
    %v156 = vpack.c.b16 %v148, %v147
    %165 = vmatprep.subr.bf16.mxu0 0
    %166 = vmatpush1.bf16.msra.mxu0 %v149
    %167 = vmatprep.subr.bf16.mxu0 0
    %168 = vmatpush1.bf16.msra.mxu0 %v150
    %169 = vmatprep.subr.bf16.mxu0 0
    %170 = vmatpush1.bf16.msra.mxu0 %v151
    %171 = vmatprep.subr.bf16.mxu0 0
    %172 = vmatpush1.bf16.msra.mxu0 %v152
    %173 = vmatprep.subr.bf16.mxu0 0
    %174 = vmatpush1.bf16.msra.mxu0 %v153
    %175 = vmatprep.subr.bf16.mxu0 0
    %176 = vmatpush1.bf16.msra.mxu0 %v154
    %177 = vmatprep.subr.bf16.mxu0 0
    %178 = vmatpush1.bf16.msra.mxu0 %v155
    %179 = vmatprep.subr.bf16.mxu0 0
    %180 = vmatpush1.bf16.msra.mxu0 %v156
    %181 = vmatprep.subr.bf16.mxu0 0
    %182 = vmatpush1.bf16.msra.mxu0 0
    %183 = vmatprep.subr.bf16.mxu0 0
    %184 = vmatpush1.bf16.msra.mxu0 0
    %185 = vmatprep.subr.bf16.mxu0 0
    %186 = vmatpush1.bf16.msra.mxu0 0
    %187 = vmatprep.subr.bf16.mxu0 0
    %188 = vmatpush1.bf16.msra.mxu0 0
    %189 = vmatprep.subr.bf16.mxu0 0
    %190 = vmatpush1.bf16.msra.mxu0 0
    %191 = vmatprep.subr.bf16.mxu0 0
    %192 = vmatpush1.bf16.msra.mxu0 0
    %193 = vmatprep.subr.bf16.mxu0 0
    %194 = vmatpush1.bf16.msra.mxu0 0
    %195 = vmatprep.subr.bf16.mxu0 0
    %196 = vmatpush1.bf16.msra.mxu0 0
    %197 = vmatprep.mubr.bf16.mxu0 0
    %198 = vmatmul.mubr.bf16.gmra.mrb[0].mxu0 %v115
    %v199 = vpop.f32.mrb[0].mxu0
    %v200 = vadd.f32 %v109, %v199
    %v201 = vpop.f32.mrb[0].mxu0
    %v202 = vpop.f32.mrb[0].mxu0
    %v203 = vadd.f32 %v109, %v202
    %v204 = vpop.f32.mrb[0].mxu0
    %205 = vdwg.mxu0
    %v206 = vmul.f32 %v200, 0.5
    %v207 = vmul.f32 %v203, 0.5
    %v208 = vmul.f32 %v200, 0.70710677
    %v209 = vmul.f32 %v203, 0.70710677
    %v210 = verf.f32.pop %v208
    %v211 = verf.f32.pop %v209
    %v212 = vadd.f32 %v210, 1.0
    %v213 = vadd.f32 %v211, 1.0
    %v214 = vmul.f32 %v206, %v212
    %v215 = vmul.f32 %v207, %v213
    %v216 = vpack.c.bf16 %v215, %v214
    %v217 = vld [vmem:[#allocation8] sm:$0xf]
    %v218 = vld [vmem:[#allocation8 + $0x4] sm:$0xf]
    %v219 = vld [vmem:[#allocation8 + $0x8] sm:$0xf]
    %v220 = vld [vmem:[#allocation8 + $0xc] sm:$0xf]
    %v221 = vld [vmem:[#allocation8 + $0x10] sm:$0xf]
    %v222 = vld [vmem:[#allocation8 + $0x14] sm:$0xf]
    %v223 = vld [vmem:[#allocation8 + $0x18] sm:$0xf]
    %v224 = vld [vmem:[#allocation8 + $0x1c] sm:$0xf]
    %v225 = vld [vmem:[#allocation8 + $0x20] sm:$0xf]
    %v226 = vld [vmem:[#allocation8 + $0x24] sm:$0xf]
    %v227 = vld [vmem:[#allocation8 + $0x28] sm:$0xf]
    %v228 = vld [vmem:[#allocation8 + $0x2c] sm:$0xf]
    %v229 = vld [vmem:[#allocation8 + $0x30] sm:$0xf]
    %v230 = vld [vmem:[#allocation8 + $0x34] sm:$0xf]
    %v231 = vld [vmem:[#allocation8 + $0x38] sm:$0xf]
    %v232 = vld [vmem:[#allocation8 + $0x3c] sm:$0xf]
    %v233 = vld [vmem:[#allocation10] sm:$0x1]
    %v235 = vlaneseq
    %v236 = vshrl.u32 %v235, 7
    %v237 = vsub.s32 0, %v236
    %v238 = vrot.slane %v233, %v237
    %v256 = vunpack.c.l.b16 %v217
    %v257 = vunpack.c.l.b16 %v218
    %v258 = vunpack.c.l.b16 %v219
    %v259 = vunpack.c.l.b16 %v220
    %v260 = vunpack.c.l.b16 %v221
    %v261 = vunpack.c.l.b16 %v222
    %v262 = vunpack.c.l.b16 %v223
    %v263 = vunpack.c.l.b16 %v224
    %v264 = vunpack.c.l.b16 %v225
    %v265 = vunpack.c.l.b16 %v226
    %v266 = vunpack.c.l.b16 %v227
    %v267 = vunpack.c.l.b16 %v228
    %v268 = vunpack.c.l.b16 %v229
    %v269 = vunpack.c.l.b16 %v230
    %v270 = vunpack.c.l.b16 %v231
    %v271 = vunpack.c.l.b16 %v232
    %v272 = vpack.c.b16 %v257, %v256
    %v273 = vpack.c.b16 %v259, %v258
    %v274 = vpack.c.b16 %v261, %v260
    %v275 = vpack.c.b16 %v263, %v262
    %v276 = vpack.c.b16 %v265, %v264
    %v277 = vpack.c.b16 %v267, %v266
    %v278 = vpack.c.b16 %v269, %v268
    %v279 = vpack.c.b16 %v271, %v270
    %288 = vmatprep.subr.bf16.mxu0 0
    %289 = vmatpush1.bf16.msra.mxu0 %v272
    %290 = vmatprep.subr.bf16.mxu0 0
    %291 = vmatpush1.bf16.msra.mxu0 %v273
    %292 = vmatprep.subr.bf16.mxu0 0
    %293 = vmatpush1.bf16.msra.mxu0 %v274
    %294 = vmatprep.subr.bf16.mxu0 0
    %295 = vmatpush1.bf16.msra.mxu0 %v275
    %296 = vmatprep.subr.bf16.mxu0 0
    %297 = vmatpush1.bf16.msra.mxu0 %v276
    %298 = vmatprep.subr.bf16.mxu0 0
    %299 = vmatpush1.bf16.msra.mxu0 %v277
    %300 = vmatprep.subr.bf16.mxu0 0
    %301 = vmatpush1.bf16.msra.mxu0 %v278
    %302 = vmatprep.subr.bf16.mxu0 0
    %303 = vmatpush1.bf16.msra.mxu0 %v279
    %304 = vmatprep.subr.bf16.mxu0 0
    %305 = vmatpush1.bf16.msra.mxu0 0
    %306 = vmatprep.subr.bf16.mxu0 0
    %307 = vmatpush1.bf16.msra.mxu0 0
    %308 = vmatprep.subr.bf16.mxu0 0
    %309 = vmatpush1.bf16.msra.mxu0 0
    %310 = vmatprep.subr.bf16.mxu0 0
    %311 = vmatpush1.bf16.msra.mxu0 0
    %312 = vmatprep.subr.bf16.mxu0 0
    %313 = vmatpush1.bf16.msra.mxu0 0
    %314 = vmatprep.subr.bf16.mxu0 0
    %315 = vmatpush1.bf16.msra.mxu0 0
    %316 = vmatprep.subr.bf16.mxu0 0
    %317 = vmatpush1.bf16.msra.mxu0 0
    %318 = vmatprep.subr.bf16.mxu0 0
    %319 = vmatpush1.bf16.msra.mxu0 0
    %320 = vmatprep.mubr.bf16.mxu0 0
    %321 = vmatmul.mubr.bf16.gmra.mrb[0].mxu0 %v216
    %v322 = vpop.f32.mrb[0].mxu0
    %v323 = vadd.f32 %v238, %v322
    %v324 = vpop.f32.mrb[0].mxu0
    %v325 = vpop.f32.mrb[0].mxu0
    %v326 = vadd.f32 %v238, %v325
    %v327 = vpop.f32.mrb[0].mxu0
    %328 = vdwg.mxu0
    %329 = vst [vmem:[#allocation11] sm:$0xff] %v323
    %330 = vst [vmem:[#allocation11 + $0x8] sm:$0xff] %v326
    // Predicated region
    $region42: #{tpu_custom_call.1} parent=1 // pred_check
      _
    $region43: #{tpu_custom_call.1} parent=1 // pred_check_branch
      %332 = sbr.rel (0) target = $region45
    $region44: #{tpu_custom_call.1} parent=1 // pred_region
      %s334 = ssub.s32 256, 256
      %335 = vsyncadd [#allocation4], %s334
      %s336 = sshll.u32 [#allocation11], 4
      %s337 = int_to_ptr.vmem [resolvable:$true] %s336
      %342 = dma.vmem_to_hbm [thread:$0]  %s337, 256, %s5, [#allocation4], 128, 128, 8
    $region45: #{tpu_custom_call.1} parent=1 // pred_fallthru
      _
    // Predicated region
    $region46: #{tpu_custom_call.1} parent=1 // pred_check
      _
    $region47: #{tpu_custom_call.1} parent=1 // pred_check_branch
      %344 = sbr.rel (0) target = $region49
    $region48: #{tpu_custom_call.1} parent=1 // pred_region
      %345 = dma.done [#allocation4], 256
    $region49: #{tpu_custom_call.1} parent=1 // pred_fallthru
      _
    %346 = vsyncpa [#allocation3], 1
    %347 = vsyncpa [#allocation6], 1
    %348 = vsyncpa [#allocation9], 1
    %349 = vsyncpa [#allocation4], 1

</llo_original>
